<compile_context>
chip_gen: v7x
topology: tpu7x:2x2x1
jax: 0.10.0
libtpu: 0.0.40
codegen_flags: <defaults>
</compile_context>

<pallas_src>
import jax
import jax.numpy as jnp
from jax.experimental import pallas as pl
from jax.experimental.pallas import tpu as pltpu

KH = KW = 3          # kernel_size = 3
PAD = 1              # padding = 1
BN_EPS = 1e-5
LANE = 128


def _round_up(x, m):
    return (x + m - 1) // m * m


def _make_kernel(tm, m_valid):
    """Fused conv(matmul) + BN(batch stats, two-phase) + ReLU kernel body."""
    inv_m = 1.0 / float(m_valid)

    def kernel(x_ref, w_ref, b_ref, g_ref, bt_ref, o_ref, sum_ref, sq_ref):
        phase = pl.program_id(0)   # 0: accumulate BN stats, 1: normalize
        blk = pl.program_id(1)     # row-block index

        # Fused depthwise+pointwise conv: one MXU matmul over K = 9*Cin.
        y = jnp.dot(x_ref[...], w_ref[...], preferred_element_type=jnp.float32)
        y = y + b_ref[...]                        # (1, Coutp) broadcast bias

        @pl.when(jnp.logical_and(phase == 0, blk == 0))
        def _init():
            sum_ref[...] = jnp.zeros_like(sum_ref)
            sq_ref[...] = jnp.zeros_like(sq_ref)

        @pl.when(phase == 0)
        def _accumulate():
            # One-pass BN stats: masked column sum / sum-of-squares computed as
            # ones-row matmuls (MXU), masking off zero-padded rows.
            col = jax.lax.broadcasted_iota(jnp.int32, (1, tm), 1)
            mask = ((blk * tm + col) < m_valid).astype(jnp.float32)
            sum_ref[...] += jnp.dot(mask, y, preferred_element_type=jnp.float32)
            sq_ref[...] += jnp.dot(mask, y * y,
                                   preferred_element_type=jnp.float32)
            o_ref[...] = jnp.zeros_like(o_ref)    # deterministic placeholder

        @pl.when(phase == 1)
        def _finalize():
            # Global batch stats (biased variance, matches PyTorch training BN).
            mean = sum_ref[...] * inv_m
            var = sq_ref[...] * inv_m - mean * mean
            scale = g_ref[...] * jax.lax.rsqrt(var + BN_EPS)   # (1, Coutp)
            shift = bt_ref[...] - mean * scale                 # (1, Coutp)
            o_ref[...] = jnp.maximum(y * scale + shift, 0.0).astype(o_ref.dtype)

    return kernel


def ds_basic_conv_forward(x_nchw, dw_w, dw_b, pw_w, pw_b, gamma, beta):
    """Fused forward of ds_basic_conv.  NCHW in -> NCHW out (f32)."""
    N, Cin, H, W = x_nchw.shape
    Cout = pw_w.shape[0]
    K = KH * KW * Cin
    M = N * H * W

    # ---- plain-JAX prep (fused by XLA under the surrounding jit) -----------
    # NCHW -> NHWC, halo pad, im2col to (M, 9*Cin).
    # TODO(synk): at production sizes handle the halo + im2col inside the
    # kernel (index_map over padded rows) instead of materializing a 9x patch
    # tensor in HBM.
    x = jnp.transpose(x_nchw, (0, 2, 3, 1)).astype(jnp.float32)
    x_pad = jnp.pad(x, ((0, 0), (PAD, PAD), (PAD, PAD), (0, 0)))
    taps = [x_pad[:, kh:kh + H, kw:kw + W, :]
            for kh in range(KH) for kw in range(KW)]
    patches = jnp.stack(taps, axis=3).reshape(M, K)

    # Fold depthwise into pointwise: W_big[(t,c), o] = dw[t,c] * pw[c,o],
    # effective bias b_eff = pb + db @ pw.
    dw = jnp.transpose(dw_w[:, 0, :, :], (1, 2, 0)).reshape(KH * KW, Cin)
    pw = jnp.transpose(pw_w[:, :, 0, 0], (1, 0)).astype(jnp.float32)
    w_big = (dw.astype(jnp.float32)[:, :, None] * pw[None, :, :]).reshape(K, Cout)
    b_eff = pw_b.astype(jnp.float32) + dw_b.astype(jnp.float32) @ pw

    # Lane-dense output: pad Cout to a multiple of 128; pad rows to TM.
    coutp = _round_up(Cout, LANE)
    tm = LANE if M >= LANE else _round_up(M, 8)
    mp = _round_up(M, tm)
    nblk = mp // tm

    patches_p = jnp.pad(patches, ((0, mp - M), (0, 0)))
    w_big_p = jnp.pad(w_big, ((0, 0), (0, coutp - Cout)))
    b_eff_p = jnp.pad(b_eff, (0, coutp - Cout)).reshape(1, coutp)
    g_p = jnp.pad(gamma.astype(jnp.float32), (0, coutp - Cout)).reshape(1, coutp)
    bt_p = jnp.pad(beta.astype(jnp.float32), (0, coutp - Cout)).reshape(1, coutp)

    kernel = _make_kernel(tm, M)

    grid_spec = pltpu.PrefetchScalarGridSpec(
        num_scalar_prefetch=0,
        grid=(2, nblk),                                   # (phase, row-block)
        in_specs=[
            pl.BlockSpec((tm, K), lambda p, b: (b, 0)),       # im2col patches
            pl.BlockSpec((K, coutp), lambda p, b: (0, 0)),    # fused conv weight
            pl.BlockSpec((1, coutp), lambda p, b: (0, 0)),    # fused bias
            pl.BlockSpec((1, coutp), lambda p, b: (0, 0)),    # BN gamma
            pl.BlockSpec((1, coutp), lambda p, b: (0, 0)),    # BN beta
        ],
        out_specs=pl.BlockSpec((tm, coutp), lambda p, b: (b, 0)),
        scratch_shapes=[
            pltpu.VMEM((1, coutp), jnp.float32),   # running sum   (BN)
            pltpu.VMEM((1, coutp), jnp.float32),   # running sumsq (BN)
        ],
    )

    out2d = pl.pallas_call(
        kernel,
        out_shape=jax.ShapeDtypeStruct((mp, coutp), jnp.float32),
        grid_spec=grid_spec,
        # Both axes must stay sequential: phase 1 consumes the GLOBAL BN stats
        # accumulated across all row blocks in phase 0 (VMEM scratch).
        # TODO(synk): for v7x megacore keep per-core partial stats (CMEM or a
        # second tiny pass) so the row axis can be marked "parallel".
        compiler_params=pltpu.CompilerParams(
            dimension_semantics=("arbitrary", "arbitrary")),
    )(patches_p, w_big_p, b_eff_p, g_p, bt_p)

    out = out2d[:M, :Cout].reshape(N, H, W, Cout)
    return jnp.transpose(out, (0, 3, 1, 2))


def _reference(x_nchw, dw_w, dw_b, pw_w, pw_b, gamma, beta):
    """Pure-JAX reference of the same forward (correctness check)."""
    N, Cin, H, W = x_nchw.shape
    x = jnp.pad(x_nchw.astype(jnp.float32),
                ((0, 0), (0, 0), (PAD, PAD), (PAD, PAD)))
    acc = jnp.zeros((N, Cin, H, W), jnp.float32)
    for kh in range(KH):
        for kw in range(KW):
            acc = acc + x[:, :, kh:kh + H, kw:kw + W] * \
                dw_w[None, :, 0, kh, kw][..., None, None]
    acc = acc + dw_b[None, :, None, None]
    y = jnp.einsum('nchw,oc->nohw', acc, pw_w[:, :, 0, 0]) + pw_b[None, :, None, None]
    mean = jnp.mean(y, axis=(0, 2, 3), keepdims=True)
    var = jnp.mean((y - mean) ** 2, axis=(0, 2, 3), keepdims=True)
    y = (y - mean) * jax.lax.rsqrt(var + BN_EPS)
    y = y * gamma[None, :, None, None] + beta[None, :, None, None]
    return jnp.maximum(y, 0.0)


if __name__ == "__main__":
    key = jax.random.PRNGKey(0)
    k_x, k_dw, k_db, k_pw, k_pb = jax.random.split(key, 5)

    N, Cin, Cout, H, W = 2, 4, 8, 16, 16

    x = jax.random.normal(k_x, (N, Cin, H, W), jnp.float32)

    # deterministic parameter init (shapes match the nn.Module's __init__)
    fan_dw = 1 * KH * KW
    dw_w = jax.random.uniform(k_dw, (Cin, 1, KH, KW), jnp.float32,
                              -1.0 / fan_dw ** 0.5, 1.0 / fan_dw ** 0.5)
    dw_b = jax.random.uniform(k_db, (Cin,), jnp.float32,
                              -1.0 / fan_dw ** 0.5, 1.0 / fan_dw ** 0.5)
    fan_pw = Cin
    pw_w = jax.random.uniform(k_pw, (Cout, Cin, 1, 1), jnp.float32,
                              -1.0 / fan_pw ** 0.5, 1.0 / fan_pw ** 0.5)
    pw_b = jax.random.uniform(k_pb, (Cout,), jnp.float32,
                              -1.0 / fan_pw ** 0.5, 1.0 / fan_pw ** 0.5)
    gamma = jnp.ones((Cout,), jnp.float32)   # BatchNorm2d default weight
    beta = jnp.zeros((Cout,), jnp.float32)   # BatchNorm2d default bias

    out = jax.jit(ds_basic_conv_forward)(x, dw_w, dw_b, pw_w, pw_b, gamma, beta)
    out = jax.block_until_ready(out)

    ref = _reference(x, dw_w, dw_b, pw_w, pw_b, gamma, beta)
    assert out.shape == (N, Cout, H, W)
    assert jnp.allclose(out, ref, atol=1e-4, rtol=1e-4), "mismatch vs reference"

    print("KERNEL_OK")
</pallas_src>

<mosaic_0001>
module attributes {stable_mosaic.version = 11 : i64} {
  func.func @kernel(%arg0: i32, %arg1: i32, %arg2: memref<128x36xf32, #tpu.memory_space<vmem>>, %arg3: memref<36x128xf32, #tpu.memory_space<vmem>>, %arg4: memref<1x128xf32, #tpu.memory_space<vmem>>, %arg5: memref<1x128xf32, #tpu.memory_space<vmem>>, %arg6: memref<1x128xf32, #tpu.memory_space<vmem>>, %arg7: memref<128x128xf32, #tpu.memory_space<vmem>>, %arg8: memref<1x128xf32, #tpu.memory_space<vmem>>, %arg9: memref<1x128xf32, #tpu.memory_space<vmem>>) attributes {dimension_semantics = [#tpu.dimension_semantics<arbitrary>, #tpu.dimension_semantics<arbitrary>], iteration_bounds = array<i64: 2, 4>, scalar_prefetch = 0 : i64, scratch_operands = 2 : i64, tpu.core_type = #tpu.core_type<tc>, window_params = [{transform_indices = @transform_0, window_bounds = array<i64: 128, 36>}, {pipeline_mode = #tpu.pipeline_mode<synchronous>, transform_indices = @transform_1, window_bounds = array<i64: 36, 128>}, {pipeline_mode = #tpu.pipeline_mode<synchronous>, transform_indices = @transform_2, window_bounds = array<i64: 1, 128>}, {pipeline_mode = #tpu.pipeline_mode<synchronous>, transform_indices = @transform_3, window_bounds = array<i64: 1, 128>}, {pipeline_mode = #tpu.pipeline_mode<synchronous>, transform_indices = @transform_4, window_bounds = array<i64: 1, 128>}, {transform_indices = @transform_5, window_bounds = array<i64: 128, 128>}]} {
    %c0 = arith.constant 0 : index
    %c0_0 = arith.constant 0 : index
    %0 = vector.load %arg2[%c0, %c0_0] : memref<128x36xf32, #tpu.memory_space<vmem>>, vector<128x36xf32>
    %c0_1 = arith.constant 0 : index
    %c0_2 = arith.constant 0 : index
    %1 = vector.load %arg3[%c0_1, %c0_2] : memref<36x128xf32, #tpu.memory_space<vmem>>, vector<36x128xf32>
    %cst = arith.constant dense<0.000000e+00> : vector<128x128xf32>
    %2 = tpu.matmul %0, %1, %cst {dimension_numbers = #tpu.dot_dimension_numbers<[1], [0], [0], [1], [0, 0, 1, 1], [], []>} : vector<128x36xf32>, vector<36x128xf32>, vector<128x128xf32> -> vector<128x128xf32>
    %c0_3 = arith.constant 0 : index
    %c0_4 = arith.constant 0 : index
    %3 = vector.load %arg4[%c0_3, %c0_4] : memref<1x128xf32, #tpu.memory_space<vmem>>, vector<1x128xf32>
    %4 = vector.broadcast %3 : vector<1x128xf32> to vector<128x128xf32>
    %5 = arith.addf %2, %4 : vector<128x128xf32>
    %c0_i32 = arith.constant 0 : i32
    %6 = arith.cmpi eq, %arg0, %c0_i32 : i32
    %c0_i32_5 = arith.constant 0 : i32
    %7 = arith.cmpi eq, %arg1, %c0_i32_5 : i32
    %8 = arith.andi %6, %7 : i1
    %9 = arith.extui %8 : i1 to i32
    %c0_i32_6 = arith.constant 0 : i32
    %10 = arith.cmpi ne, %9, %c0_i32_6 : i32
    scf.if %10 {
      %cst_10 = arith.constant 0.000000e+00 : f32
      %17 = vector.broadcast %cst_10 : f32 to vector<1x128xf32>
      %c0_11 = arith.constant 0 : index
      %c0_12 = arith.constant 0 : index
      %18 = vector.load %arg8[%c0_11, %c0_12] : memref<1x128xf32, #tpu.memory_space<vmem>>, vector<1x128xf32>
      tpu.vector_store %arg8[%c0_11, %c0_12], %17 {strides = array<i32>} : memref<1x128xf32, #tpu.memory_space<vmem>>, vector<1x128xf32>,
      %cst_13 = arith.constant 0.000000e+00 : f32
      %19 = vector.broadcast %cst_13 : f32 to vector<1x128xf32>
      %c0_14 = arith.constant 0 : index
      %c0_15 = arith.constant 0 : index
      %20 = vector.load %arg9[%c0_14, %c0_15] : memref<1x128xf32, #tpu.memory_space<vmem>>, vector<1x128xf32>
      tpu.vector_store %arg9[%c0_14, %c0_15], %19 {strides = array<i32>} : memref<1x128xf32, #tpu.memory_space<vmem>>, vector<1x128xf32>,
    } else {
    }
    %c0_i32_7 = arith.constant 0 : i32
    %11 = arith.cmpi eq, %arg0, %c0_i32_7 : i32
    %12 = arith.extui %11 : i1 to i32
    %c0_i32_8 = arith.constant 0 : i32
    %13 = arith.cmpi ne, %12, %c0_i32_8 : i32
    scf.if %13 {
      %17 = tpu.iota {dimensions = array<i32: 1>} : vector<1x128xi32>
      %c128_i32 = arith.constant 128 : i32
      %18 = arith.muli %arg1, %c128_i32 : i32
      %19 = vector.broadcast %18 : i32 to vector<1x128xi32>
      %20 = arith.addi %19, %17 : vector<1x128xi32>
      %c512_i32 = arith.constant 512 : i32
      %21 = vector.broadcast %c512_i32 : i32 to vector<1x128xi32>
      %22 = arith.cmpi slt, %20, %21 : vector<1x128xi32>
      %23 = arith.extui %22 : vector<1x128xi1> to vector<1x128xi32>
      %24 = arith.sitofp %23 : vector<1x128xi32> to vector<1x128xf32>
      %c0_10 = arith.constant 0 : index
      %c0_11 = arith.constant 0 : index
      %25 = vector.load %arg8[%c0_10, %c0_11] : memref<1x128xf32, #tpu.memory_space<vmem>>, vector<1x128xf32>
      %cst_12 = arith.constant dense<0.000000e+00> : vector<1x128xf32>
      %26 = tpu.matmul %24, %5, %cst_12 {dimension_numbers = #tpu.dot_dimension_numbers<[1], [0], [0], [1], [0, 0, 1, 1], [], []>} : vector<1x128xf32>, vector<128x128xf32>, vector<1x128xf32> -> vector<1x128xf32>
      %27 = arith.addf %25, %26 : vector<1x128xf32>
      %c0_13 = arith.constant 0 : index
      %c0_14 = arith.constant 0 : index
      %28 = vector.load %arg8[%c0_13, %c0_14] : memref<1x128xf32, #tpu.memory_space<vmem>>, vector<1x128xf32>
      tpu.vector_store %arg8[%c0_13, %c0_14], %27 {strides = array<i32>} : memref<1x128xf32, #tpu.memory_space<vmem>>, vector<1x128xf32>,
      %c0_15 = arith.constant 0 : index
      %c0_16 = arith.constant 0 : index
      %29 = vector.load %arg9[%c0_15, %c0_16] : memref<1x128xf32, #tpu.memory_space<vmem>>, vector<1x128xf32>
      %30 = arith.mulf %5, %5 : vector<128x128xf32>
      %cst_17 = arith.constant dense<0.000000e+00> : vector<1x128xf32>
      %31 = tpu.matmul %24, %30, %cst_17 {dimension_numbers = #tpu.dot_dimension_numbers<[1], [0], [0], [1], [0, 0, 1, 1], [], []>} : vector<1x128xf32>, vector<128x128xf32>, vector<1x128xf32> -> vector<1x128xf32>
      %32 = arith.addf %29, %31 : vector<1x128xf32>
      %c0_18 = arith.constant 0 : index
      %c0_19 = arith.constant 0 : index
      %33 = vector.load %arg9[%c0_18, %c0_19] : memref<1x128xf32, #tpu.memory_space<vmem>>, vector<1x128xf32>
      tpu.vector_store %arg9[%c0_18, %c0_19], %32 {strides = array<i32>} : memref<1x128xf32, #tpu.memory_space<vmem>>, vector<1x128xf32>,
      %cst_20 = arith.constant 0.000000e+00 : f32
      %34 = vector.broadcast %cst_20 : f32 to vector<128x128xf32>
      %c0_21 = arith.constant 0 : index
      %c0_22 = arith.constant 0 : index
      %35 = vector.load %arg7[%c0_21, %c0_22] : memref<128x128xf32, #tpu.memory_space<vmem>>, vector<128x128xf32>
      tpu.vector_store %arg7[%c0_21, %c0_22], %34 {strides = array<i32>} : memref<128x128xf32, #tpu.memory_space<vmem>>, vector<128x128xf32>,
    } else {
    }
    %c1_i32 = arith.constant 1 : i32
    %14 = arith.cmpi eq, %arg0, %c1_i32 : i32
    %15 = arith.extui %14 : i1 to i32
    %c0_i32_9 = arith.constant 0 : i32
    %16 = arith.cmpi ne, %15, %c0_i32_9 : i32
    scf.if %16 {
      %c0_10 = arith.constant 0 : index
      %c0_11 = arith.constant 0 : index
      %17 = vector.load %arg8[%c0_10, %c0_11] : memref<1x128xf32, #tpu.memory_space<vmem>>, vector<1x128xf32>
      %cst_12 = arith.constant 0.001953125 : f32
      %18 = vector.broadcast %cst_12 : f32 to vector<1x128xf32>
      %19 = arith.mulf %17, %18 : vector<1x128xf32>
      %c0_13 = arith.constant 0 : index
      %c0_14 = arith.constant 0 : index
      %20 = vector.load %arg9[%c0_13, %c0_14] : memref<1x128xf32, #tpu.memory_space<vmem>>, vector<1x128xf32>
      %cst_15 = arith.constant 0.001953125 : f32
      %21 = vector.broadcast %cst_15 : f32 to vector<1x128xf32>
      %22 = arith.mulf %20, %21 : vector<1x128xf32>
      %23 = arith.mulf %19, %19 : vector<1x128xf32>
      %24 = arith.subf %22, %23 : vector<1x128xf32>
      %c0_16 = arith.constant 0 : index
      %c0_17 = arith.constant 0 : index
      %25 = vector.load %arg5[%c0_16, %c0_17] : memref<1x128xf32, #tpu.memory_space<vmem>>, vector<1x128xf32>
      %cst_18 = arith.constant 9.99999974E-6 : f32
      %26 = vector.broadcast %cst_18 : f32 to vector<1x128xf32>
      %27 = arith.addf %24, %26 : vector<1x128xf32>
      %28 = math.rsqrt %27 : vector<1x128xf32>
      %29 = arith.mulf %25, %28 : vector<1x128xf32>
      %c0_19 = arith.constant 0 : index
      %c0_20 = arith.constant 0 : index
      %30 = vector.load %arg6[%c0_19, %c0_20] : memref<1x128xf32, #tpu.memory_space<vmem>>, vector<1x128xf32>
      %31 = arith.mulf %19, %29 : vector<1x128xf32>
      %32 = arith.subf %30, %31 : vector<1x128xf32>
      %33 = vector.broadcast %29 : vector<1x128xf32> to vector<128x128xf32>
      %34 = arith.mulf %5, %33 : vector<128x128xf32>
      %35 = vector.broadcast %32 : vector<1x128xf32> to vector<128x128xf32>
      %36 = arith.addf %34, %35 : vector<128x128xf32>
      %cst_21 = arith.constant 0.000000e+00 : f32
      %37 = vector.broadcast %cst_21 : f32 to vector<128x128xf32>
      %38 = arith.maximumf %36, %37 : vector<128x128xf32>
      %c0_22 = arith.constant 0 : index
      %c0_23 = arith.constant 0 : index
      %39 = vector.load %arg7[%c0_22, %c0_23] : memref<128x128xf32, #tpu.memory_space<vmem>>, vector<128x128xf32>
      tpu.vector_store %arg7[%c0_22, %c0_23], %38 {strides = array<i32>} : memref<128x128xf32, #tpu.memory_space<vmem>>, vector<128x128xf32>,
    } else {
    }
    return
  }
  func.func @transform_0(%arg0: i32, %arg1: i32) -> (i32, i32) {
    %c0_i32 = arith.constant 0 : i32
    %c0_i32_0 = arith.constant 0 : i32
    return %arg1, %c0_i32 : i32, i32
  }
  func.func @transform_1(%arg0: i32, %arg1: i32) -> (i32, i32) {
    %c0_i32 = arith.constant 0 : i32
    %c0_i32_0 = arith.constant 0 : i32
    %c0_i32_1 = arith.constant 0 : i32
    return %c0_i32, %c0_i32_0 : i32, i32
  }
  func.func @transform_2(%arg0: i32, %arg1: i32) -> (i32, i32) {
    %c0_i32 = arith.constant 0 : i32
    %c0_i32_0 = arith.constant 0 : i32
    %c0_i32_1 = arith.constant 0 : i32
    return %c0_i32, %c0_i32_0 : i32, i32
  }
  func.func @transform_3(%arg0: i32, %arg1: i32) -> (i32, i32) {
    %c0_i32 = arith.constant 0 : i32
    %c0_i32_0 = arith.constant 0 : i32
    %c0_i32_1 = arith.constant 0 : i32
    return %c0_i32, %c0_i32_0 : i32, i32
  }
  func.func @transform_4(%arg0: i32, %arg1: i32) -> (i32, i32) {
    %c0_i32 = arith.constant 0 : i32
    %c0_i32_0 = arith.constant 0 : i32
    %c0_i32_1 = arith.constant 0 : i32
    return %c0_i32, %c0_i32_0 : i32, i32
  }
  func.func @transform_5(%arg0: i32, %arg1: i32) -> (i32, i32) {
    %c0_i32 = arith.constant 0 : i32
    %c0_i32_0 = arith.constant 0 : i32
    return %arg1, %c0_i32 : i32, i32
  }
}

</mosaic_0001>

<llo_original>
// kernel: ds_basic_conv_forward.1
$region0: #{ds_basic_conv_forward.1}
  #allocation0 [shape = 'u32[]', space=smem, size = 0x4, offset = 0x4, fixed_abs, tag = 'smem constant byte address 0x4 - core index']
  #allocation1 [shape = 'u32[144,128]{1,0:T(1,128)}', space=vmem, size = 0x12000, scoped, tag = 'internal scratch']
  #allocation2 [shape = 'f32[1,128]{1,0:T(1,128)}', space=vmem, size = 0x200, scoped, tag = 'scratch operand']
  #allocation3 [shape = 'f32[1,128]{1,0:T(1,128)}', space=vmem, size = 0x200, scoped, tag = 'scratch operand']
  %s0 = inlined_call_operand.vmem [shape: f32[512,36], index: 0, kind: input, shape index: {}]
  %s1 = inlined_call_operand.vmem [shape: f32[36,128], index: 1, kind: input, shape index: {}]
  %s2 = inlined_call_operand.vmem [shape: f32[1,128], index: 2, kind: input, shape index: {}]
  %s3 = inlined_call_operand.vmem [shape: f32[1,128], index: 3, kind: input, shape index: {}]
  %s4 = inlined_call_operand.vmem [shape: f32[1,128], index: 4, kind: input, shape index: {}]
  %s5 = inlined_call_operand.vmem [shape: f32[512,128], index: 5, kind: output, shape index: {}]
  %s6 = sld [smem:[#allocation0]]
  $region65: #{ds_basic_conv_forward.1} parent=0
    _
  %s8 = ssub.s32 1, %s6
  %s9 = scalar_select 0, %s8, %s6
  loop: start=0, step=1, limit=10
  $region2: #{ds_basic_conv_forward.1} parent=0 // loop_pre_header
    _
  $region3: #{ds_basic_conv_forward.1} parent=0 // loop_header
    %s11 = sphi 0, %s15
    %p12 = scmp.ge.s32.totalorder %s11, 10
    %s18 = sphi 0, %s30
    %s19 = sphi 0, %s26
    %s20 = sphi 0, %s18
    %s21 = sphi 0, %s19
    %s22 = sphi 0, %s20
    %s23 = sphi 0, %s21
    %s33 = sphi 0, %s35
    %s36 = sphi 0, %s33
    %s37 = sphi 0, %s36
    %s53 = sphi 0, %s37
    %s57 = sphi 0, %s57
    %s59 = sphi 0, %s57
    %s60 = sphi 0, %s59
    %s74 = sphi 0, %s60
    %s78 = sphi 0, %s78
    %s80 = sphi 0, %s78
    %s81 = sphi 0, %s80
    %s95 = sphi 0, %s81
    %s99 = sphi 0, %s99
    %s101 = sphi 0, %s99
    %s102 = sphi 0, %s101
    %s116 = sphi 0, %s102
    %s120 = sphi 0, %s120
    %s122 = sphi 0, %s120
    %s123 = sphi 0, %s122
    %s137 = sphi 0, %s123
    %s143 = sphi 0, %s145
    %s146 = sphi 0, %s143
    %s147 = sphi 0, %s146
    %s163 = sphi 0, %s147
  $region4: #{ds_basic_conv_forward.1} parent=0 // loop_header_branch
    %14 = sbr.rel (%p12) target = $region8
  $region5: #{ds_basic_conv_forward.1} parent=0 // loop_body
    %s16 = ssub.s32 %s11, 1
    %s17 = ssub.s32 %s11, 2
    %s24 = sadd.s32 1, %s19
    %p25 = scmp.ge.s32.totalorder %s24, 4
    %s26 = scalar_select %p25, 0, %s24
    %s27 = sadd.s32 1, %s18
    %s28 = scalar_select %p25, %s27, %s18
    %p29 = scmp.ge.s32.totalorder %s28, 2
    %s30 = scalar_select %p29, 0, %s28
    %s31 = ssub.s32 %s19, %s26
    %p32 = scmp.eq.s32.totalorder %s31, 0
    %s34 = sadd.s32 %s33, 1
    %s35 = scalar_select %p32, %s33, %s34
    %p38 = pneg %p32
    %p39 = scmp.eq.s32.totalorder %s11, 7
    %p40 = por %p38, %p39
    %p41 = scmp.ne.s32.totalorder %s33, %s36
    %p42 = scmp.eq.s32.totalorder %s11, 0
    %p43 = por %p41, %p42
    %p44 = scmp.ne.s32.totalorder %s33, %s36
    %p45 = scmp.eq.s32.totalorder %s16, 7
    %p46 = por %p44, %p45
    %p47 = scmp.ne.s32.totalorder %s36, %s37
    %p48 = scmp.eq.s32.totalorder %s16, 0
    %p49 = por %p47, %p48
    %p50 = scmp.ne.s32.totalorder %s36, %s37
    %p51 = scmp.eq.s32.totalorder %s17, 7
    %p52 = por %p50, %p51
    %p54 = scmp.ne.s32.totalorder %s37, %s53
    %p55 = scmp.eq.s32.totalorder %s17, 0
    %p56 = por %p54, %p55
    %s58 = sadd.s32 %s57, 1
    %p61 = scmp.eq.s32.totalorder %s11, 7
    %p62 = scmp.ne.s32.totalorder %s57, %s59
    %p63 = scmp.eq.s32.totalorder %s11, 0
    %p64 = por %p62, %p63
    %p65 = scmp.ne.s32.totalorder %s57, %s59
    %p66 = scmp.eq.s32.totalorder %s16, 7
    %p67 = por %p65, %p66
    %p68 = scmp.ne.s32.totalorder %s59, %s60
    %p69 = scmp.eq.s32.totalorder %s16, 0
    %p70 = por %p68, %p69
    %p71 = scmp.ne.s32.totalorder %s59, %s60
    %p72 = scmp.eq.s32.totalorder %s17, 7
    %p73 = por %p71, %p72
    %p75 = scmp.ne.s32.totalorder %s60, %s74
    %p76 = scmp.eq.s32.totalorder %s17, 0
    %p77 = por %p75, %p76
    %s79 = sadd.s32 %s78, 1
    %p82 = scmp.eq.s32.totalorder %s11, 7
    %p83 = scmp.ne.s32.totalorder %s78, %s80
    %p84 = scmp.eq.s32.totalorder %s11, 0
    %p85 = por %p83, %p84
    %p86 = scmp.ne.s32.totalorder %s78, %s80
    %p87 = scmp.eq.s32.totalorder %s16, 7
    %p88 = por %p86, %p87
    %p89 = scmp.ne.s32.totalorder %s80, %s81
    %p90 = scmp.eq.s32.totalorder %s16, 0
    %p91 = por %p89, %p90
    %p92 = scmp.ne.s32.totalorder %s80, %s81
    %p93 = scmp.eq.s32.totalorder %s17, 7
    %p94 = por %p92, %p93
    %p96 = scmp.ne.s32.totalorder %s81, %s95
    %p97 = scmp.eq.s32.totalorder %s17, 0
    %p98 = por %p96, %p97
    %s100 = sadd.s32 %s99, 1
    %p103 = scmp.eq.s32.totalorder %s11, 7
    %p104 = scmp.ne.s32.totalorder %s99, %s101
    %p105 = scmp.eq.s32.totalorder %s11, 0
    %p106 = por %p104, %p105
    %p107 = scmp.ne.s32.totalorder %s99, %s101
    %p108 = scmp.eq.s32.totalorder %s16, 7
    %p109 = por %p107, %p108
    %p110 = scmp.ne.s32.totalorder %s101, %s102
    %p111 = scmp.eq.s32.totalorder %s16, 0
    %p112 = por %p110, %p111
    %p113 = scmp.ne.s32.totalorder %s101, %s102
    %p114 = scmp.eq.s32.totalorder %s17, 7
    %p115 = por %p113, %p114
    %p117 = scmp.ne.s32.totalorder %s102, %s116
    %p118 = scmp.eq.s32.totalorder %s17, 0
    %p119 = por %p117, %p118
    %s121 = sadd.s32 %s120, 1
    %p124 = scmp.eq.s32.totalorder %s11, 7
    %p125 = scmp.ne.s32.totalorder %s120, %s122
    %p126 = scmp.eq.s32.totalorder %s11, 0
    %p127 = por %p125, %p126
    %p128 = scmp.ne.s32.totalorder %s120, %s122
    %p129 = scmp.eq.s32.totalorder %s16, 7
    %p130 = por %p128, %p129
    %p131 = scmp.ne.s32.totalorder %s122, %s123
    %p132 = scmp.eq.s32.totalorder %s16, 0
    %p133 = por %p131, %p132
    %p134 = scmp.ne.s32.totalorder %s122, %s123
    %p135 = scmp.eq.s32.totalorder %s17, 7
    %p136 = por %p134, %p135
    %p138 = scmp.ne.s32.totalorder %s123, %s137
    %p139 = scmp.eq.s32.totalorder %s17, 0
    %p140 = por %p138, %p139
    %s141 = ssub.s32 %s19, %s26
    %p142 = scmp.eq.s32.totalorder %s141, 0
    %s144 = sadd.s32 %s143, 1
    %s145 = scalar_select %p142, %s143, %s144
    %p148 = pneg %p142
    %p149 = scmp.eq.s32.totalorder %s11, 7
    %p150 = por %p148, %p149
    %p151 = scmp.ne.s32.totalorder %s143, %s146
    %p152 = scmp.eq.s32.totalorder %s11, 0
    %p153 = por %p151, %p152
    %p154 = scmp.ne.s32.totalorder %s143, %s146
    %p155 = scmp.eq.s32.totalorder %s16, 7
    %p156 = por %p154, %p155
    %p157 = scmp.ne.s32.totalorder %s146, %s147
    %p158 = scmp.eq.s32.totalorder %s16, 0
    %p159 = por %p157, %p158
    %p160 = scmp.ne.s32.totalorder %s146, %s147
    %p161 = scmp.eq.s32.totalorder %s17, 7
    %p162 = por %p160, %p161
    %p164 = scmp.ne.s32.totalorder %s147, %s163
    %p165 = scmp.eq.s32.totalorder %s17, 0
    %p166 = por %p164, %p165
    %p167 = scmp.le.s32.totalorder 1, %s11
    %p168 = scmp.lt.s32.totalorder %s11, 9
    %p169 = pnand %p167, %p168
    %p170 = pneg %p169
    // Predicated region
    $region9: #{ds_basic_conv_forward.1} parent=5 // pred_check
      _
    $region10: #{ds_basic_conv_forward.1} parent=5 // pred_check_branch
      %172 = sbr.rel (%p169) target = $region12
    $region11: #{ds_basic_conv_forward.1} parent=5 // pred_region
      %s173 = ssub.s32 %s11, 1
      // Predicated region
      $region13: #{ds_basic_conv_forward.1} parent=11 // pred_check
        %p174 = pneg %p70
      $region14: #{ds_basic_conv_forward.1} parent=11 // pred_check_branch
        %176 = sbr.rel (%p174) target = $region16
      $region15: #{ds_basic_conv_forward.1} parent=11 // pred_region
        _
      $region16: #{ds_basic_conv_forward.1} parent=11 // pred_fallthru
        _
      // Predicated region
      $region17: #{ds_basic_conv_forward.1} parent=11 // pred_check
        %p177 = pneg %p91
      $region18: #{ds_basic_conv_forward.1} parent=11 // pred_check_branch
        %179 = sbr.rel (%p177) target = $region20
      $region19: #{ds_basic_conv_forward.1} parent=11 // pred_region
        _
      $region20: #{ds_basic_conv_forward.1} parent=11 // pred_fallthru
        _
      // Predicated region
      $region21: #{ds_basic_conv_forward.1} parent=11 // pred_check
        %p180 = pneg %p112
      $region22: #{ds_basic_conv_forward.1} parent=11 // pred_check_branch
        %182 = sbr.rel (%p180) target = $region24
      $region23: #{ds_basic_conv_forward.1} parent=11 // pred_region
        _
      $region24: #{ds_basic_conv_forward.1} parent=11 // pred_fallthru
        _
      // Predicated region
      $region25: #{ds_basic_conv_forward.1} parent=11 // pred_check
        %p183 = pneg %p133
      $region26: #{ds_basic_conv_forward.1} parent=11 // pred_check_branch
        %185 = sbr.rel (%p183) target = $region28
      $region27: #{ds_basic_conv_forward.1} parent=11 // pred_region
        _
      $region28: #{ds_basic_conv_forward.1} parent=11 // pred_fallthru
        _
    $region12: #{ds_basic_conv_forward.1} parent=5 // pred_fallthru
      _
    %p186 = scmp.lt.s32.totalorder %s11, 8
    // Predicated region
    $region29: #{ds_basic_conv_forward.1} parent=5 // pred_check
      %p187 = pneg %p186
    $region30: #{ds_basic_conv_forward.1} parent=5 // pred_check_branch
      %189 = sbr.rel (%p187) target = $region32
    $region31: #{ds_basic_conv_forward.1} parent=5 // pred_region
      // Predicated region
      $region33: #{ds_basic_conv_forward.1} parent=31 // pred_check
        %p190 = pneg %p43
      $region34: #{ds_basic_conv_forward.1} parent=31 // pred_check_branch
        %192 = sbr.rel (%p190) target = $region36
      $region35: #{ds_basic_conv_forward.1} parent=31 // pred_region
        %s193 = smul.u32 16, %s19
        %p194 = scmp.lt.s32.totalorder %s193, 63
        %s195 = scalar_select %p194, %s193, 63
        %s196 = smul.addr %s195, 8
        %s197 = scalar_lea.vmem %s0, %s196
        %s198 = smul.u32 16, %s19
      $region36: #{ds_basic_conv_forward.1} parent=31 // pred_fallthru
        _
    $region32: #{ds_basic_conv_forward.1} parent=5 // pred_fallthru
      _
    %p199 = scmp.le.s32.totalorder 1, %s11
    %p200 = scmp.lt.s32.totalorder %s11, 9
    %p201 = pnand %p199, %p200
    %p202 = pneg %p201
    // Predicated region
    $region37: #{ds_basic_conv_forward.1} parent=5 // pred_check
      _
    $region38: #{ds_basic_conv_forward.1} parent=5 // pred_check_branch
      %204 = sbr.rel (%p201) target = $region40
    $region39: #{ds_basic_conv_forward.1} parent=5 // pred_region
      %s205 = ssub.s32 %s11, 1
      %s206 = smul.u32 16, %s21
      %p207 = scmp.lt.s32.totalorder %s206, 63
      %s208 = scalar_select %p207, %s206, 63
      %s209 = smul.addr %s208, 8
      %s210 = scalar_lea.vmem %s0, %s209
      %p211 = pneg %p49
      %p212 = pneg %p46
      %p213 = pneg %p70
      %p214 = pneg %p67
      %p215 = pneg %p91
      %p216 = pneg %p88
      %p217 = pneg %p112
      %p218 = pneg %p109
      %p219 = pneg %p133
      %p220 = pneg %p130
      %p221 = pneg %p159
      %p222 = pneg %p156
      %s223 = smul.u32 16, %s21
      %p224 = scmp.lt.s32.totalorder %s223, 63
      %s225 = scalar_select %p224, %s223, 63
      %s226 = smul.addr %s225, 8
      %s227 = scalar_lea.vmem %s5, %s226
      %s228 = smul.u32 16, %s21
      %p229 = scmp.lt.s32.totalorder %s228, 63
      %s230 = scalar_select %p229, %s228, 63
      %s231 = smul.addr %s230, 8
      %s232 = scalar_lea.vmem %s0, %s231
      %s233 = smul.u32 16, %s21
      %s234 = smul.u32 16, %s21
      %p235 = scmp.lt.s32.totalorder %s234, 63
      %s236 = scalar_select %p235, %s234, 63
      %s237 = smul.addr %s236, 8
      %s238 = scalar_lea.vmem %s5, %s237
      %s239 = smul.u32 16, %s21
      %v240 = vld [vmem:[%s232] sm:$0xff]
      %v241 = vld [vmem:[%s232 + $0x8] sm:$0xff]
      %v242 = vld [vmem:[%s232 + $0x10] sm:$0xff]
      %v243 = vld [vmem:[%s232 + $0x18] sm:$0xff]
      %v244 = vld [vmem:[%s232 + $0x20] sm:$0xff]
      %v245 = vld [vmem:[%s232 + $0x28] sm:$0xff]
      %v246 = vld [vmem:[%s232 + $0x30] sm:$0xff]
      %v247 = vld [vmem:[%s232 + $0x38] sm:$0xff]
      %v248 = vld [vmem:[%s232 + $0x40] sm:$0xff]
      %v249 = vld [vmem:[%s232 + $0x48] sm:$0xff]
      %v250 = vld [vmem:[%s232 + $0x50] sm:$0xff]
      %v251 = vld [vmem:[%s232 + $0x58] sm:$0xff]
      %v252 = vld [vmem:[%s232 + $0x60] sm:$0xff]
      %v253 = vld [vmem:[%s232 + $0x68] sm:$0xff]
      %v254 = vld [vmem:[%s232 + $0x70] sm:$0xff]
      %v255 = vld [vmem:[%s232 + $0x78] sm:$0xff]
      %v256 = vld [vmem:[%s1] sm:$0xff]
      %v257 = vld [vmem:[%s1 + $0x8] sm:$0xff]
      %v258 = vld [vmem:[%s1 + $0x10] sm:$0xff]
      %v259 = vld [vmem:[%s1 + $0x18] sm:$0xff]
      %v260 = vld [vmem:[%s1 + $0x20] sm:$0xf]
      %v261 = vld [vmem:[%s2] sm:$0x1]
      %v263 = vlaneseq
      %v264 = vshrl.u32 %v263, 7
      %v265 = vsub.s32 0, %v264
      %v266 = vrot.slane %v261, %v265
      %vm268 = vcmask 293888
      %v270 = vsel %vm268, %v240, 0
      %v273 = vsel %vm268, %v241, 0
      %v276 = vsel %vm268, %v242, 0
      %v279 = vsel %vm268, %v243, 0
      %v282 = vsel %vm268, %v244, 0
      %v285 = vsel %vm268, %v245, 0
      %v288 = vsel %vm268, %v246, 0
      %v291 = vsel %vm268, %v247, 0
      %v294 = vsel %vm268, %v248, 0
      %v297 = vsel %vm268, %v249, 0
      %v300 = vsel %vm268, %v250, 0
      %v303 = vsel %vm268, %v251, 0
      %v306 = vsel %vm268, %v252, 0
      %v309 = vsel %vm268, %v253, 0
      %v312 = vsel %vm268, %v254, 0
      %v315 = vsel %vm268, %v255, 0
      %vm317 = vcmask 1043456
      %v319 = vsel %vm317, %v260, 0
      %321 = vmatprep.subr.mxu0 0.0
      %322 = vmatpush1.msra.mxu0 %v256
      %323 = vmatprep.subr.mxu0 0.0
      %324 = vmatpush1.msra.mxu0 %v257
      %325 = vmatprep.subr.mxu0 0.0
      %326 = vmatpush1.msra.mxu0 %v258
      %327 = vmatprep.subr.mxu0 0.0
      %328 = vmatpush1.msra.mxu0 %v259
      %329 = vmatprep.subr.mxu0 0.0
      %330 = vmatpush1.msra.mxu0 %v319
      %331 = vmatprep.subr.mxu0 0.0
      %332 = vmatpush1.msra.mxu0 0.0
      %333 = vmatprep.subr.mxu0 0.0
      %334 = vmatpush1.msra.mxu0 0.0
      %335 = vmatprep.subr.mxu0 0.0
      %336 = vmatpush1.msra.mxu0 0.0
      %337 = vmatprep.subr.mxu0 0.0
      %338 = vmatpush1.msra.mxu0 0.0
      %339 = vmatprep.subr.mxu0 0.0
      %340 = vmatpush1.msra.mxu0 0.0
      %341 = vmatprep.subr.mxu0 0.0
      %342 = vmatpush1.msra.mxu0 0.0
      %343 = vmatprep.subr.mxu0 0.0
      %344 = vmatpush1.msra.mxu0 0.0
      %345 = vmatprep.subr.mxu0 0.0
      %346 = vmatpush1.msra.mxu0 0.0
      %347 = vmatprep.subr.mxu0 0.0
      %348 = vmatpush1.msra.mxu0 0.0
      %349 = vmatprep.subr.mxu0 0.0
      %350 = vmatpush1.msra.mxu0 0.0
      %351 = vmatprep.subr.mxu0 0.0
      %352 = vmatpush1.msra.mxu0 0.0
      %353 = vmatprep.subr.mxu0 0.0
      %354 = vmatpush1.msra.mxu0 0.0
      %355 = vmatprep.subr.mxu0 0.0
      %356 = vmatpush1.msra.mxu0 0.0
      %357 = vmatprep.subr.mxu0 0.0
      %358 = vmatpush1.msra.mxu0 0.0
      %359 = vmatprep.subr.mxu0 0.0
      %360 = vmatpush1.msra.mxu0 0.0
      %361 = vmatprep.subr.mxu0 0.0
      %362 = vmatpush1.msra.mxu0 0.0
      %363 = vmatprep.subr.mxu0 0.0
      %364 = vmatpush1.msra.mxu0 0.0
      %365 = vmatprep.subr.mxu0 0.0
      %366 = vmatpush1.msra.mxu0 0.0
      %367 = vmatprep.subr.mxu0 0.0
      %368 = vmatpush1.msra.mxu0 0.0
      %369 = vmatprep.subr.mxu0 0.0
      %370 = vmatpush1.msra.mxu0 0.0
      %371 = vmatprep.subr.mxu0 0.0
      %372 = vmatpush1.msra.mxu0 0.0
      %373 = vmatprep.subr.mxu0 0.0
      %374 = vmatpush1.msra.mxu0 0.0
      %375 = vmatprep.subr.mxu0 0.0
      %376 = vmatpush1.msra.mxu0 0.0
      %377 = vmatprep.subr.mxu0 0.0
      %378 = vmatpush1.msra.mxu0 0.0
      %379 = vmatprep.subr.mxu0 0.0
      %380 = vmatpush1.msra.mxu0 0.0
      %381 = vmatprep.subr.mxu0 0.0
      %382 = vmatpush1.msra.mxu0 0.0
      %383 = vmatprep.subr.mxu0 0.0
      %384 = vmatpush1.msra.mxu0 0.0
      %385 = vmatprep.mubr.f32.mxu0 0.0
      %386 = vmatmul.mubr.f32.gmra.mrb[0].mxu0 %v270
      %v387 = vpop.f32.mrb[0].mxu0
      %v388 = vadd.f32 %v266, %v387
      %v389 = vpop.f32.mrb[0].mxu0
      %390 = vmatprep.mubr.f32.mxu0 0.0
      %391 = vmatmul.mubr.f32.gmra.mrb[0].mxu0 %v273
      %v392 = vpop.f32.mrb[0].mxu0
      %v393 = vadd.f32 %v266, %v392
      %v394 = vpop.f32.mrb[0].mxu0
      %395 = vmatprep.mubr.f32.mxu0 0.0
      %396 = vmatmul.mubr.f32.gmra.mrb[0].mxu0 %v276
      %v397 = vpop.f32.mrb[0].mxu0
      %v398 = vadd.f32 %v266, %v397
      %v399 = vpop.f32.mrb[0].mxu0
      %400 = vmatprep.mubr.f32.mxu0 0.0
      %401 = vmatmul.mubr.f32.gmra.mrb[0].mxu0 %v279
      %v402 = vpop.f32.mrb[0].mxu0
      %v403 = vadd.f32 %v266, %v402
      %v404 = vpop.f32.mrb[0].mxu0
      %405 = vmatprep.mubr.f32.mxu0 0.0
      %406 = vmatmul.mubr.f32.gmra.mrb[0].mxu0 %v282
      %v407 = vpop.f32.mrb[0].mxu0
      %v408 = vadd.f32 %v266, %v407
      %v409 = vpop.f32.mrb[0].mxu0
      %410 = vmatprep.mubr.f32.mxu0 0.0
      %411 = vmatmul.mubr.f32.gmra.mrb[0].mxu0 %v285
      %v412 = vpop.f32.mrb[0].mxu0
      %v413 = vadd.f32 %v266, %v412
      %v414 = vpop.f32.mrb[0].mxu0
      %415 = vmatprep.mubr.f32.mxu0 0.0
      %416 = vmatmul.mubr.f32.gmra.mrb[0].mxu0 %v288
      %v417 = vpop.f32.mrb[0].mxu0
      %v418 = vadd.f32 %v266, %v417
      %v419 = vpop.f32.mrb[0].mxu0
      %420 = vmatprep.mubr.f32.mxu0 0.0
      %421 = vmatmul.mubr.f32.gmra.mrb[0].mxu0 %v291
      %v422 = vpop.f32.mrb[0].mxu0
      %v423 = vadd.f32 %v266, %v422
      %v424 = vpop.f32.mrb[0].mxu0
      %425 = vmatprep.mubr.f32.mxu0 0.0
      %426 = vmatmul.mubr.f32.gmra.mrb[0].mxu0 %v294
      %v427 = vpop.f32.mrb[0].mxu0
      %v428 = vadd.f32 %v266, %v427
      %v429 = vpop.f32.mrb[0].mxu0
      %430 = vmatprep.mubr.f32.mxu0 0.0
      %431 = vmatmul.mubr.f32.gmra.mrb[0].mxu0 %v297
      %v432 = vpop.f32.mrb[0].mxu0
      %v433 = vadd.f32 %v266, %v432
      %v434 = vpop.f32.mrb[0].mxu0
      %435 = vmatprep.mubr.f32.mxu0 0.0
      %436 = vmatmul.mubr.f32.gmra.mrb[0].mxu0 %v300
      %v437 = vpop.f32.mrb[0].mxu0
      %v438 = vadd.f32 %v266, %v437
      %v439 = vpop.f32.mrb[0].mxu0
      %440 = vmatprep.mubr.f32.mxu0 0.0
      %441 = vmatmul.mubr.f32.gmra.mrb[0].mxu0 %v303
      %v442 = vpop.f32.mrb[0].mxu0
      %v443 = vadd.f32 %v266, %v442
      %v444 = vpop.f32.mrb[0].mxu0
      %445 = vmatprep.mubr.f32.mxu0 0.0
      %446 = vmatmul.mubr.f32.gmra.mrb[0].mxu0 %v306
      %v447 = vpop.f32.mrb[0].mxu0
      %v448 = vadd.f32 %v266, %v447
      %v449 = vpop.f32.mrb[0].mxu0
      %450 = vmatprep.mubr.f32.mxu0 0.0
      %451 = vmatmul.mubr.f32.gmra.mrb[0].mxu0 %v309
      %v452 = vpop.f32.mrb[0].mxu0
      %v453 = vadd.f32 %v266, %v452
      %v454 = vpop.f32.mrb[0].mxu0
      %455 = vmatprep.mubr.f32.mxu0 0.0
      %456 = vmatmul.mubr.f32.gmra.mrb[0].mxu0 %v312
      %v457 = vpop.f32.mrb[0].mxu0
      %v458 = vadd.f32 %v266, %v457
      %v459 = vpop.f32.mrb[0].mxu0
      %460 = vmatprep.mubr.f32.mxu0 0.0
      %461 = vmatmul.mubr.f32.gmra.mrb[0].mxu0 %v315
      %v462 = vpop.f32.mrb[0].mxu0
      %v463 = vadd.f32 %v266, %v462
      %v464 = vpop.f32.mrb[0].mxu0
      %465 = vdwg.mxu0
      %p466 = scmp.eq.s32.totalorder %s20, 0
      %p467 = scmp.eq.s32.totalorder %s21, 0
      %p468 = pnand %p466, %p467
      %p469 = pneg %p468
      // Predicated region
      $region41: #{ds_basic_conv_forward.1} parent=39 // pred_check
        _
      $region42: #{ds_basic_conv_forward.1} parent=39 // pred_check_branch
        %471 = sbr.rel (%p468) target = $region44
      $region43: #{ds_basic_conv_forward.1} parent=39 // pred_region
        %472 = vst [vmem:[#allocation2] sm:$0x1] 0.0
        %473 = vst [vmem:[#allocation3] sm:$0x1] 0.0
      $region44: #{ds_basic_conv_forward.1} parent=39 // pred_fallthru
        _
      // Predicated region
      $region45: #{ds_basic_conv_forward.1} parent=39 // pred_check
        %p474 = pneg %p466
      $region46: #{ds_basic_conv_forward.1} parent=39 // pred_check_branch
        %476 = sbr.rel (%p474) target = $region48
      $region47: #{ds_basic_conv_forward.1} parent=39 // pred_region
        %v477 = vlaneseq
        %v478 = vand.u32 %v477, 127
        %s479 = smul.u32 %s21, 128
        %v480 = vstv %s479
        %v481 = vadd.s32 %v480, %v478
        %vm482 = vcmp.lt.s32.totalorder %v481, 512
        %v483 = vsel %vm482, 1, 0
        %v484 = vcvt.s32.f32 %v483
        %v485 = vld [vmem:[#allocation2] sm:$0x1]
        %486 = vmatprep.subr.mxu0 0.0
        %487 = vmatpush1.msra.mxu0 %v388
        %488 = vmatprep.subr.mxu0 0.0
        %489 = vmatpush1.msra.mxu0 %v393
        %490 = vmatprep.subr.mxu0 0.0
        %491 = vmatpush1.msra.mxu0 %v398
        %492 = vmatprep.subr.mxu0 0.0
        %493 = vmatpush1.msra.mxu0 %v403
        %494 = vmatprep.subr.mxu0 0.0
        %495 = vmatpush1.msra.mxu0 %v408
        %496 = vmatprep.subr.mxu0 0.0
        %497 = vmatpush1.msra.mxu0 %v413
        %498 = vmatprep.subr.mxu0 0.0
        %499 = vmatpush1.msra.mxu0 %v418
        %500 = vmatprep.subr.mxu0 0.0
        %501 = vmatpush1.msra.mxu0 %v423
        %502 = vmatprep.subr.mxu0 0.0
        %503 = vmatpush1.msra.mxu0 %v428
        %504 = vmatprep.subr.mxu0 0.0
        %505 = vmatpush1.msra.mxu0 %v433
        %506 = vmatprep.subr.mxu0 0.0
        %507 = vmatpush1.msra.mxu0 %v438
        %508 = vmatprep.subr.mxu0 0.0
        %509 = vmatpush1.msra.mxu0 %v443
        %510 = vmatprep.subr.mxu0 0.0
        %511 = vmatpush1.msra.mxu0 %v448
        %512 = vmatprep.subr.mxu0 0.0
        %513 = vmatpush1.msra.mxu0 %v453
        %514 = vmatprep.subr.mxu0 0.0
        %515 = vmatpush1.msra.mxu0 %v458
        %516 = vmatprep.subr.mxu0 0.0
        %517 = vmatpush1.msra.mxu0 %v463
        %518 = vmatprep.subr.mxu0 0.0
        %519 = vmatpush1.msra.mxu0 0.0
        %520 = vmatprep.subr.mxu0 0.0
        %521 = vmatpush1.msra.mxu0 0.0
        %522 = vmatprep.subr.mxu0 0.0
        %523 = vmatpush1.msra.mxu0 0.0
        %524 = vmatprep.subr.mxu0 0.0
        %525 = vmatpush1.msra.mxu0 0.0
        %526 = vmatprep.subr.mxu0 0.0
        %527 = vmatpush1.msra.mxu0 0.0
        %528 = vmatprep.subr.mxu0 0.0
        %529 = vmatpush1.msra.mxu0 0.0
        %530 = vmatprep.subr.mxu0 0.0
        %531 = vmatpush1.msra.mxu0 0.0
        %532 = vmatprep.subr.mxu0 0.0
        %533 = vmatpush1.msra.mxu0 0.0
        %534 = vmatprep.subr.mxu0 0.0
        %535 = vmatpush1.msra.mxu0 0.0
        %536 = vmatprep.subr.mxu0 0.0
        %537 = vmatpush1.msra.mxu0 0.0
        %538 = vmatprep.subr.mxu0 0.0
        %539 = vmatpush1.msra.mxu0 0.0
        %540 = vmatprep.subr.mxu0 0.0
        %541 = vmatpush1.msra.mxu0 0.0
        %542 = vmatprep.subr.mxu0 0.0
        %543 = vmatpush1.msra.mxu0 0.0
        %544 = vmatprep.subr.mxu0 0.0
        %545 = vmatpush1.msra.mxu0 0.0
        %546 = vmatprep.subr.mxu0 0.0
        %547 = vmatpush1.msra.mxu0 0.0
        %548 = vmatprep.subr.mxu0 0.0
        %549 = vmatpush1.msra.mxu0 0.0
        %550 = vmatprep.mubr.f32.mxu0 0.0
        %551 = vmatmul.mubr.f32.gmra.mrb[0].mxu0 %v484
        %v552 = vpop.f32.mrb[0].mxu0
        %v553 = vadd.f32 0.0, %v552
        %v554 = vpop.f32.mrb[0].mxu0
        %555 = vdwg.mxu0
        %v556 = vadd.f32 %v485, %v553
        %557 = vst [vmem:[#allocation2] sm:$0x1] %v556
        %v558 = vld [vmem:[#allocation3] sm:$0x1]
        %v559 = vmul.f32 %v388, %v388
        %v560 = vmul.f32 %v393, %v393
        %v561 = vmul.f32 %v398, %v398
        %v562 = vmul.f32 %v403, %v403
        %v563 = vmul.f32 %v408, %v408
        %v564 = vmul.f32 %v413, %v413
        %v565 = vmul.f32 %v418, %v418
        %v566 = vmul.f32 %v423, %v423
        %v567 = vmul.f32 %v428, %v428
        %v568 = vmul.f32 %v433, %v433
        %v569 = vmul.f32 %v438, %v438
        %v570 = vmul.f32 %v443, %v443
        %v571 = vmul.f32 %v448, %v448
        %v572 = vmul.f32 %v453, %v453
        %v573 = vmul.f32 %v458, %v458
        %v574 = vmul.f32 %v463, %v463
        %575 = vmatprep.subr.mxu0 0.0
        %576 = vmatpush1.msra.mxu0 %v559
        %577 = vmatprep.subr.mxu0 0.0
        %578 = vmatpush1.msra.mxu0 %v560
        %579 = vmatprep.subr.mxu0 0.0
        %580 = vmatpush1.msra.mxu0 %v561
        %581 = vmatprep.subr.mxu0 0.0
        %582 = vmatpush1.msra.mxu0 %v562
        %583 = vmatprep.subr.mxu0 0.0
        %584 = vmatpush1.msra.mxu0 %v563
        %585 = vmatprep.subr.mxu0 0.0
        %586 = vmatpush1.msra.mxu0 %v564
        %587 = vmatprep.subr.mxu0 0.0
        %588 = vmatpush1.msra.mxu0 %v565
        %589 = vmatprep.subr.mxu0 0.0
        %590 = vmatpush1.msra.mxu0 %v566
        %591 = vmatprep.subr.mxu0 0.0
        %592 = vmatpush1.msra.mxu0 %v567
        %593 = vmatprep.subr.mxu0 0.0
        %594 = vmatpush1.msra.mxu0 %v568
        %595 = vmatprep.subr.mxu0 0.0
        %596 = vmatpush1.msra.mxu0 %v569
        %597 = vmatprep.subr.mxu0 0.0
        %598 = vmatpush1.msra.mxu0 %v570
        %599 = vmatprep.subr.mxu0 0.0
        %600 = vmatpush1.msra.mxu0 %v571
        %601 = vmatprep.subr.mxu0 0.0
        %602 = vmatpush1.msra.mxu0 %v572
        %603 = vmatprep.subr.mxu0 0.0
        %604 = vmatpush1.msra.mxu0 %v573
        %605 = vmatprep.subr.mxu0 0.0
        %606 = vmatpush1.msra.mxu0 %v574
        %607 = vmatprep.subr.mxu0 0.0
        %608 = vmatpush1.msra.mxu0 0.0
        %609 = vmatprep.subr.mxu0 0.0
        %610 = vmatpush1.msra.mxu0 0.0
        %611 = vmatprep.subr.mxu0 0.0
        %612 = vmatpush1.msra.mxu0 0.0
        %613 = vmatprep.subr.mxu0 0.0
        %614 = vmatpush1.msra.mxu0 0.0
        %615 = vmatprep.subr.mxu0 0.0
        %616 = vmatpush1.msra.mxu0 0.0
        %617 = vmatprep.subr.mxu0 0.0
        %618 = vmatpush1.msra.mxu0 0.0
        %619 = vmatprep.subr.mxu0 0.0
        %620 = vmatpush1.msra.mxu0 0.0
        %621 = vmatprep.subr.mxu0 0.0
        %622 = vmatpush1.msra.mxu0 0.0
        %623 = vmatprep.subr.mxu0 0.0
        %624 = vmatpush1.msra.mxu0 0.0
        %625 = vmatprep.subr.mxu0 0.0
        %626 = vmatpush1.msra.mxu0 0.0
        %627 = vmatprep.subr.mxu0 0.0
        %628 = vmatpush1.msra.mxu0 0.0
        %629 = vmatprep.subr.mxu0 0.0
        %630 = vmatpush1.msra.mxu0 0.0
        %631 = vmatprep.subr.mxu0 0.0
        %632 = vmatpush1.msra.mxu0 0.0
        %633 = vmatprep.subr.mxu0 0.0
        %634 = vmatpush1.msra.mxu0 0.0
        %635 = vmatprep.subr.mxu0 0.0
        %636 = vmatpush1.msra.mxu0 0.0
        %637 = vmatprep.subr.mxu0 0.0
        %638 = vmatpush1.msra.mxu0 0.0
        %639 = vmatprep.mubr.f32.mxu0 0.0
        %640 = vmatmul.mubr.f32.gmra.mrb[0].mxu0 %v484
        %v641 = vpop.f32.mrb[0].mxu0
        %v642 = vadd.f32 0.0, %v641
        %v643 = vpop.f32.mrb[0].mxu0
        %644 = vdwg.mxu0
        %v645 = vadd.f32 %v558, %v642
        %646 = vst [vmem:[#allocation3] sm:$0x1] %v645
        %647 = vst [vmem:[%s238] sm:$0xff] 0.0
        %648 = vst [vmem:[%s238 + $0x8] sm:$0xff] 0.0
        %649 = vst [vmem:[%s238 + $0x10] sm:$0xff] 0.0
        %650 = vst [vmem:[%s238 + $0x18] sm:$0xff] 0.0
        %651 = vst [vmem:[%s238 + $0x20] sm:$0xff] 0.0
        %652 = vst [vmem:[%s238 + $0x28] sm:$0xff] 0.0
        %653 = vst [vmem:[%s238 + $0x30] sm:$0xff] 0.0
        %654 = vst [vmem:[%s238 + $0x38] sm:$0xff] 0.0
        %655 = vst [vmem:[%s238 + $0x40] sm:$0xff] 0.0
        %656 = vst [vmem:[%s238 + $0x48] sm:$0xff] 0.0
        %657 = vst [vmem:[%s238 + $0x50] sm:$0xff] 0.0
        %658 = vst [vmem:[%s238 + $0x58] sm:$0xff] 0.0
        %659 = vst [vmem:[%s238 + $0x60] sm:$0xff] 0.0
        %660 = vst [vmem:[%s238 + $0x68] sm:$0xff] 0.0
        %661 = vst [vmem:[%s238 + $0x70] sm:$0xff] 0.0
        %662 = vst [vmem:[%s238 + $0x78] sm:$0xff] 0.0
      $region48: #{ds_basic_conv_forward.1} parent=39 // pred_fallthru
        _
      %p663 = scmp.eq.s32.totalorder %s20, 1
      // Predicated region
      $region49: #{ds_basic_conv_forward.1} parent=39 // pred_check
        %p664 = pneg %p663
      $region50: #{ds_basic_conv_forward.1} parent=39 // pred_check_branch
        %666 = sbr.rel (%p664) target = $region52
      $region51: #{ds_basic_conv_forward.1} parent=39 // pred_region
        %v667 = vld [vmem:[#allocation2] sm:$0x1]
        %v668 = vmul.f32 %v667, 0.001953125
        %v669 = vld [vmem:[#allocation3] sm:$0x1]
        %v670 = vmul.f32 %v669, 0.001953125
        %v671 = vmul.f32 %v668, %v668
        %v672 = vsub.f32 %v670, %v671
        %v673 = vld [vmem:[%s3] sm:$0x1]
        %v674 = vadd.f32 %v672, 1e-05
        %v675 = vrsqrt.pop %v674
        %v676 = vmul.f32 %v673, %v675
        %v677 = vld [vmem:[%s4] sm:$0x1]
        %v678 = vmul.f32 %v668, %v676
        %v679 = vsub.f32 %v677, %v678
        %v681 = vlaneseq
        %v682 = vshrl.u32 %v681, 7
        %v683 = vsub.s32 0, %v682
        %v684 = vrot.slane %v676, %v683
        %v686 = vmul.f32 %v388, %v684
        %v687 = vmul.f32 %v393, %v684
        %v688 = vmul.f32 %v398, %v684
        %v689 = vmul.f32 %v403, %v684
        %v690 = vmul.f32 %v408, %v684
        %v691 = vmul.f32 %v413, %v684
        %v692 = vmul.f32 %v418, %v684
        %v693 = vmul.f32 %v423, %v684
        %v694 = vmul.f32 %v428, %v684
        %v695 = vmul.f32 %v433, %v684
        %v696 = vmul.f32 %v438, %v684
        %v697 = vmul.f32 %v443, %v684
        %v698 = vmul.f32 %v448, %v684
        %v699 = vmul.f32 %v453, %v684
        %v700 = vmul.f32 %v458, %v684
        %v701 = vmul.f32 %v463, %v684
        %v703 = vlaneseq
        %v704 = vshrl.u32 %v703, 7
        %v705 = vsub.s32 0, %v704
        %v706 = vrot.slane %v679, %v705
        %v708 = vadd.f32 %v686, %v706
        %v709 = vadd.f32 %v687, %v706
        %v710 = vadd.f32 %v688, %v706
        %v711 = vadd.f32 %v689, %v706
        %v712 = vadd.f32 %v690, %v706
        %v713 = vadd.f32 %v691, %v706
        %v714 = vadd.f32 %v692, %v706
        %v715 = vadd.f32 %v693, %v706
        %v716 = vadd.f32 %v694, %v706
        %v717 = vadd.f32 %v695, %v706
        %v718 = vadd.f32 %v696, %v706
        %v719 = vadd.f32 %v697, %v706
        %v720 = vadd.f32 %v698, %v706
        %v721 = vadd.f32 %v699, %v706
        %v722 = vadd.f32 %v700, %v706
        %v723 = vadd.f32 %v701, %v706
        %v724 = vmax.f32 %v708, 0.0
        %v725 = vmax.f32 %v709, 0.0
        %v726 = vmax.f32 %v710, 0.0
        %v727 = vmax.f32 %v711, 0.0
        %v728 = vmax.f32 %v712, 0.0
        %v729 = vmax.f32 %v713, 0.0
        %v730 = vmax.f32 %v714, 0.0
        %v731 = vmax.f32 %v715, 0.0
        %v732 = vmax.f32 %v716, 0.0
        %v733 = vmax.f32 %v717, 0.0
        %v734 = vmax.f32 %v718, 0.0
        %v735 = vmax.f32 %v719, 0.0
        %v736 = vmax.f32 %v720, 0.0
        %v737 = vmax.f32 %v721, 0.0
        %v738 = vmax.f32 %v722, 0.0
        %v739 = vmax.f32 %v723, 0.0
        %740 = vst [vmem:[%s238] sm:$0xff] %v724
        %741 = vst [vmem:[%s238 + $0x8] sm:$0xff] %v725
        %742 = vst [vmem:[%s238 + $0x10] sm:$0xff] %v726
        %743 = vst [vmem:[%s238 + $0x18] sm:$0xff] %v727
        %744 = vst [vmem:[%s238 + $0x20] sm:$0xff] %v728
        %745 = vst [vmem:[%s238 + $0x28] sm:$0xff] %v729
        %746 = vst [vmem:[%s238 + $0x30] sm:$0xff] %v730
        %747 = vst [vmem:[%s238 + $0x38] sm:$0xff] %v731
        %748 = vst [vmem:[%s238 + $0x40] sm:$0xff] %v732
        %749 = vst [vmem:[%s238 + $0x48] sm:$0xff] %v733
        %750 = vst [vmem:[%s238 + $0x50] sm:$0xff] %v734
        %751 = vst [vmem:[%s238 + $0x58] sm:$0xff] %v735
        %752 = vst [vmem:[%s238 + $0x60] sm:$0xff] %v736
        %753 = vst [vmem:[%s238 + $0x68] sm:$0xff] %v737
        %754 = vst [vmem:[%s238 + $0x70] sm:$0xff] %v738
        %755 = vst [vmem:[%s238 + $0x78] sm:$0xff] %v739
      $region52: #{ds_basic_conv_forward.1} parent=39 // pred_fallthru
        _
      %s756 = smul.u32 16, %s21
      %p757 = scmp.lt.s32.totalorder %s756, 63
      %s758 = scalar_select %p757, %s756, 63
      %s759 = smul.addr %s758, 8
      %s760 = scalar_lea.vmem %s5, %s759
      // Predicated region
      $region53: #{ds_basic_conv_forward.1} parent=39 // pred_check
        %p761 = pneg %p156
      $region54: #{ds_basic_conv_forward.1} parent=39 // pred_check_branch
        %763 = sbr.rel (%p761) target = $region56
      $region55: #{ds_basic_conv_forward.1} parent=39 // pred_region
        %s764 = smul.u32 16, %s21
      $region56: #{ds_basic_conv_forward.1} parent=39 // pred_fallthru
        _
    $region40: #{ds_basic_conv_forward.1} parent=5 // pred_fallthru
      _
    %p765 = scmp.le.s32.totalorder 2, %s11
    // Predicated region
    $region57: #{ds_basic_conv_forward.1} parent=5 // pred_check
      %p766 = pneg %p765
    $region58: #{ds_basic_conv_forward.1} parent=5 // pred_check_branch
      %768 = sbr.rel (%p766) target = $region60
    $region59: #{ds_basic_conv_forward.1} parent=5 // pred_region
      %s769 = ssub.s32 %s11, 2
      // Predicated region
      $region61: #{ds_basic_conv_forward.1} parent=59 // pred_check
        %p770 = pneg %p162
      $region62: #{ds_basic_conv_forward.1} parent=59 // pred_check_branch
        %772 = sbr.rel (%p770) target = $region64
      $region63: #{ds_basic_conv_forward.1} parent=59 // pred_region
        %s773 = smul.u32 16, %s23
        %p774 = scmp.lt.s32.totalorder %s773, 63
        %s775 = scalar_select %p774, %s773, 63
        %s776 = smul.addr %s775, 8
        %s777 = scalar_lea.vmem %s5, %s776
      $region64: #{ds_basic_conv_forward.1} parent=59 // pred_fallthru
        _
    $region60: #{ds_basic_conv_forward.1} parent=5 // pred_fallthru
      _
  $region6: #{ds_basic_conv_forward.1} parent=0 // loop_footer
    %s15 = sadd.s32 1, %s11
  $region7: #{ds_basic_conv_forward.1} parent=0 // loop_footer_branch
    %10 = sbr.rel target = $region3
  $region8: #{ds_basic_conv_forward.1} parent=0 // loop_exit
    _

</llo_original>
